<compile_context>
chip_gen: v6e
topology: v6e:2x2x1
jax: 0.10.0
libtpu: 0.0.40
codegen_flags: <defaults>
</compile_context>

<pallas_src>
import jax
import jax.numpy as jnp
from jax.experimental import pallas as pl
from jax.experimental.pallas import tpu as pltpu


def _sigmoid(z):
    # exp and approximate reciprocal both issue on the EUP slot (VALU stays free).
    return pl.reciprocal(1.0 + jnp.exp(-z), approx=True)


def mlp_kernel(x_ref, w1_ref, b1_ref, w2_ref, b2_ref, w3_ref, b3_ref, o_ref):
    # x_ref: (2, tr, 128) VMEM tile, batch on (sublane, lane).
    # Weights/biases are SMEM scalars; contractions are fully unrolled
    # scalar x vector FMAs on the VPU.
    x0 = x_ref[0]  # (tr, 128)
    x1 = x_ref[1]  # (tr, 128)

    # layer1: Linear(2 -> 4) + Sigmoid
    h1 = [
        _sigmoid(w1_ref[0, j] * x0 + w1_ref[1, j] * x1 + b1_ref[0, j])
        for j in range(4)
    ]

    # layer2: Linear(4 -> 4) + Sigmoid
    h2 = []
    for j in range(4):
        acc = h1[0] * w2_ref[0, j]
        for k in range(1, 4):
            acc = acc + h1[k] * w2_ref[k, j]
        h2.append(_sigmoid(acc + b2_ref[0, j]))

    # layer3: Linear(4 -> 1) + Sigmoid
    acc = h2[0] * w3_ref[0, 0]
    for k in range(1, 4):
        acc = acc + h2[k] * w3_ref[k, 0]
    o_ref[...] = _sigmoid(acc + b3_ref[0, 0]).astype(o_ref.dtype)


def network_forward(x, w1, b1, w2, b2, w3, b3, *, block_rows=1024):
    """Pallas TPU forward pass of `Network`.

    x:  (B, 2) float32
    w1: (2, 4), b1: (1, 4)     (weights stored transposed: (in, out))
    w2: (4, 4), b2: (1, 4)
    w3: (4, 1), b3: (1, 1)
    returns: (B, 1) float32
    """
    B = x.shape[0]
    lanes = 128

    # Lane-dense layout: batch -> (rows, 128); pad batch so the tile divides evenly.
    rows_needed = pl.cdiv(B, lanes)
    tr = min(block_rows, rows_needed)          # sublane rows per tile
    R = pl.cdiv(rows_needed, tr) * tr          # padded row count (multiple of tr)
    Bp = R * lanes

    xT = x.T                                   # (2, B)
    if Bp != B:
        xT = jnp.pad(xT, ((0, 0), (0, Bp - B)))
    x3 = xT.reshape(2, R, lanes)               # (2, R, 128)

    smem = lambda: pl.BlockSpec(memory_space=pltpu.MemorySpace.SMEM)

    out = pl.pallas_call(
        mlp_kernel,
        out_shape=jax.ShapeDtypeStruct((R, lanes), jnp.float32),
        grid=(R // tr,),
        in_specs=[
            pl.BlockSpec((2, tr, lanes), lambda i: (0, i, 0)),  # activations (VMEM)
            smem(), smem(), smem(), smem(), smem(), smem(),     # weights/biases (SMEM)
        ],
        out_specs=pl.BlockSpec((tr, lanes), lambda i: (i, 0)),
        compiler_params=pltpu.CompilerParams(
            dimension_semantics=("parallel",),   # megacore sharding on v7x; no-op on v5e/v6e
            vmem_limit_bytes=64 << 20,
        ),
    )(x3, w1, b1, w2, b2, w3, b3)

    # Undo the lane-dense re-layout and strip the batch padding.
    return out.reshape(Bp)[:B].reshape(B, 1)


def init_params(key):
    """Deterministic init mirroring nn.Linear shapes (stored transposed: (in, out))."""
    k1, k2, k3, k4, k5, k6 = jax.random.split(key, 6)
    w1 = jax.random.normal(k1, (2, 4), jnp.float32) * 0.5
    b1 = jax.random.normal(k2, (1, 4), jnp.float32) * 0.1
    w2 = jax.random.normal(k3, (4, 4), jnp.float32) * 0.5
    b2 = jax.random.normal(k4, (1, 4), jnp.float32) * 0.1
    w3 = jax.random.normal(k5, (4, 1), jnp.float32) * 0.5
    b3 = jax.random.normal(k6, (1, 1), jnp.float32) * 0.1
    return w1, b1, w2, b2, w3, b3


def reference_forward(x, w1, b1, w2, b2, w3, b3):
    h1 = jax.nn.sigmoid(x @ w1 + b1)
    h2 = jax.nn.sigmoid(h1 @ w2 + b2)
    return jax.nn.sigmoid(h2 @ w3 + b3)


if __name__ == "__main__":
    key = jax.random.PRNGKey(0)
    kx, kx2, kp = jax.random.split(key, 3)
    params = init_params(kp)

    # Small shape consistent with the module: batch=8, in_features=2.
    x = jax.random.normal(kx, (8, 2), jnp.float32)
    out = jax.block_until_ready(network_forward(x, *params))
    ref = reference_forward(x, *params)
    assert out.shape == (8, 1)
    assert jnp.allclose(out, ref, atol=2e-3, rtol=2e-3)

    # Exercise the multi-step pipelined grid path (several batch tiles).
    x_big = jax.random.normal(kx2, (4096, 2), jnp.float32)
    out_big = jax.block_until_ready(network_forward(x_big, *params, block_rows=8))
    ref_big = reference_forward(x_big, *params)
    assert out_big.shape == (4096, 1)
    assert jnp.allclose(out_big, ref_big, atol=2e-3, rtol=2e-3)

    print("KERNEL_OK")
</pallas_src>

<mosaic_0001>
module attributes {stable_mosaic.version = 11 : i64} {
  func.func @mlp_kernel(%arg0: i32, %arg1: memref<2x1x128xf32, #tpu.memory_space<vmem>>, %arg2: memref<2x4xf32, #tpu.memory_space<smem>>, %arg3: memref<1x4xf32, #tpu.memory_space<smem>>, %arg4: memref<4x4xf32, #tpu.memory_space<smem>>, %arg5: memref<1x4xf32, #tpu.memory_space<smem>>, %arg6: memref<4x1xf32, #tpu.memory_space<smem>>, %arg7: memref<1x1xf32, #tpu.memory_space<smem>>, %arg8: memref<1x128xf32, #tpu.memory_space<vmem>>) attributes {dimension_semantics = [#tpu.dimension_semantics<parallel>], iteration_bounds = array<i64: 1>, scalar_prefetch = 0 : i64, scratch_operands = 0 : i64, tpu.core_type = #tpu.core_type<tc>, window_params = [{transform_indices = @transform_0, window_bounds = array<i64: 2, 1, 128>}, {transform_indices = @transform_1, window_bounds = array<i64: 2, 4>}, {transform_indices = @transform_2, window_bounds = array<i64: 1, 4>}, {transform_indices = @transform_3, window_bounds = array<i64: 4, 4>}, {transform_indices = @transform_4, window_bounds = array<i64: 1, 4>}, {transform_indices = @transform_5, window_bounds = array<i64: 4, 1>}, {transform_indices = @transform_6, window_bounds = array<i64: 1, 1>}, {transform_indices = @transform_7, window_bounds = array<i64: 1, 128>}]} {
    %c0 = arith.constant 0 : index
    %c0_0 = arith.constant 0 : index
    %c0_1 = arith.constant 0 : index
    %0 = vector.load %arg1[%c0, %c0_0, %c0_1] : memref<2x1x128xf32, #tpu.memory_space<vmem>>, vector<1x1x128xf32>
    %1 = vector.shape_cast %0 : vector<1x1x128xf32> to vector<1x128xf32>
    %c1 = arith.constant 1 : index
    %c0_2 = arith.constant 0 : index
    %c0_3 = arith.constant 0 : index
    %2 = vector.load %arg1[%c1, %c0_2, %c0_3] : memref<2x1x128xf32, #tpu.memory_space<vmem>>, vector<1x1x128xf32>
    %3 = vector.shape_cast %2 : vector<1x1x128xf32> to vector<1x128xf32>
    %c0_4 = arith.constant 0 : index
    %c0_5 = arith.constant 0 : index
    %4 = memref.load %arg2[%c0_4, %c0_5] : memref<2x4xf32, #tpu.memory_space<smem>>
    %5 = vector.broadcast %4 : f32 to vector<1x128xf32>
    %6 = arith.mulf %5, %1 : vector<1x128xf32>
    %c1_6 = arith.constant 1 : index
    %c0_7 = arith.constant 0 : index
    %7 = memref.load %arg2[%c1_6, %c0_7] : memref<2x4xf32, #tpu.memory_space<smem>>
    %8 = vector.broadcast %7 : f32 to vector<1x128xf32>
    %9 = arith.mulf %8, %3 : vector<1x128xf32>
    %10 = arith.addf %6, %9 : vector<1x128xf32>
    %c0_8 = arith.constant 0 : index
    %c0_9 = arith.constant 0 : index
    %11 = memref.load %arg3[%c0_8, %c0_9] : memref<1x4xf32, #tpu.memory_space<smem>>
    %12 = vector.broadcast %11 : f32 to vector<1x128xf32>
    %13 = arith.addf %10, %12 : vector<1x128xf32>
    %cst = arith.constant 0.000000e+00 : f32
    %14 = vector.broadcast %cst : f32 to vector<1x128xf32>
    %15 = arith.subf %14, %13 : vector<1x128xf32>
    %16 = math.exp %15 : vector<1x128xf32>
    %cst_10 = arith.constant 1.000000e+00 : f32
    %17 = vector.broadcast %cst_10 : f32 to vector<1x128xf32>
    %18 = arith.addf %17, %16 : vector<1x128xf32>
    %19 = tpu.reciprocal %18 {approx = true} : vector<1x128xf32> -> vector<1x128xf32>
    %c0_11 = arith.constant 0 : index
    %c1_12 = arith.constant 1 : index
    %20 = memref.load %arg2[%c0_11, %c1_12] : memref<2x4xf32, #tpu.memory_space<smem>>
    %21 = vector.broadcast %20 : f32 to vector<1x128xf32>
    %22 = arith.mulf %21, %1 : vector<1x128xf32>
    %c1_13 = arith.constant 1 : index
    %c1_14 = arith.constant 1 : index
    %23 = memref.load %arg2[%c1_13, %c1_14] : memref<2x4xf32, #tpu.memory_space<smem>>
    %24 = vector.broadcast %23 : f32 to vector<1x128xf32>
    %25 = arith.mulf %24, %3 : vector<1x128xf32>
    %26 = arith.addf %22, %25 : vector<1x128xf32>
    %c0_15 = arith.constant 0 : index
    %c1_16 = arith.constant 1 : index
    %27 = memref.load %arg3[%c0_15, %c1_16] : memref<1x4xf32, #tpu.memory_space<smem>>
    %28 = vector.broadcast %27 : f32 to vector<1x128xf32>
    %29 = arith.addf %26, %28 : vector<1x128xf32>
    %cst_17 = arith.constant 0.000000e+00 : f32
    %30 = vector.broadcast %cst_17 : f32 to vector<1x128xf32>
    %31 = arith.subf %30, %29 : vector<1x128xf32>
    %32 = math.exp %31 : vector<1x128xf32>
    %cst_18 = arith.constant 1.000000e+00 : f32
    %33 = vector.broadcast %cst_18 : f32 to vector<1x128xf32>
    %34 = arith.addf %33, %32 : vector<1x128xf32>
    %35 = tpu.reciprocal %34 {approx = true} : vector<1x128xf32> -> vector<1x128xf32>
    %c0_19 = arith.constant 0 : index
    %c2 = arith.constant 2 : index
    %36 = memref.load %arg2[%c0_19, %c2] : memref<2x4xf32, #tpu.memory_space<smem>>
    %37 = vector.broadcast %36 : f32 to vector<1x128xf32>
    %38 = arith.mulf %37, %1 : vector<1x128xf32>
    %c1_20 = arith.constant 1 : index
    %c2_21 = arith.constant 2 : index
    %39 = memref.load %arg2[%c1_20, %c2_21] : memref<2x4xf32, #tpu.memory_space<smem>>
    %40 = vector.broadcast %39 : f32 to vector<1x128xf32>
    %41 = arith.mulf %40, %3 : vector<1x128xf32>
    %42 = arith.addf %38, %41 : vector<1x128xf32>
    %c0_22 = arith.constant 0 : index
    %c2_23 = arith.constant 2 : index
    %43 = memref.load %arg3[%c0_22, %c2_23] : memref<1x4xf32, #tpu.memory_space<smem>>
    %44 = vector.broadcast %43 : f32 to vector<1x128xf32>
    %45 = arith.addf %42, %44 : vector<1x128xf32>
    %cst_24 = arith.constant 0.000000e+00 : f32
    %46 = vector.broadcast %cst_24 : f32 to vector<1x128xf32>
    %47 = arith.subf %46, %45 : vector<1x128xf32>
    %48 = math.exp %47 : vector<1x128xf32>
    %cst_25 = arith.constant 1.000000e+00 : f32
    %49 = vector.broadcast %cst_25 : f32 to vector<1x128xf32>
    %50 = arith.addf %49, %48 : vector<1x128xf32>
    %51 = tpu.reciprocal %50 {approx = true} : vector<1x128xf32> -> vector<1x128xf32>
    %c0_26 = arith.constant 0 : index
    %c3 = arith.constant 3 : index
    %52 = memref.load %arg2[%c0_26, %c3] : memref<2x4xf32, #tpu.memory_space<smem>>
    %53 = vector.broadcast %52 : f32 to vector<1x128xf32>
    %54 = arith.mulf %53, %1 : vector<1x128xf32>
    %c1_27 = arith.constant 1 : index
    %c3_28 = arith.constant 3 : index
    %55 = memref.load %arg2[%c1_27, %c3_28] : memref<2x4xf32, #tpu.memory_space<smem>>
    %56 = vector.broadcast %55 : f32 to vector<1x128xf32>
    %57 = arith.mulf %56, %3 : vector<1x128xf32>
    %58 = arith.addf %54, %57 : vector<1x128xf32>
    %c0_29 = arith.constant 0 : index
    %c3_30 = arith.constant 3 : index
    %59 = memref.load %arg3[%c0_29, %c3_30] : memref<1x4xf32, #tpu.memory_space<smem>>
    %60 = vector.broadcast %59 : f32 to vector<1x128xf32>
    %61 = arith.addf %58, %60 : vector<1x128xf32>
    %cst_31 = arith.constant 0.000000e+00 : f32
    %62 = vector.broadcast %cst_31 : f32 to vector<1x128xf32>
    %63 = arith.subf %62, %61 : vector<1x128xf32>
    %64 = math.exp %63 : vector<1x128xf32>
    %cst_32 = arith.constant 1.000000e+00 : f32
    %65 = vector.broadcast %cst_32 : f32 to vector<1x128xf32>
    %66 = arith.addf %65, %64 : vector<1x128xf32>
    %67 = tpu.reciprocal %66 {approx = true} : vector<1x128xf32> -> vector<1x128xf32>
    %c0_33 = arith.constant 0 : index
    %c0_34 = arith.constant 0 : index
    %68 = memref.load %arg4[%c0_33, %c0_34] : memref<4x4xf32, #tpu.memory_space<smem>>
    %69 = vector.broadcast %68 : f32 to vector<1x128xf32>
    %70 = arith.mulf %19, %69 : vector<1x128xf32>
    %c1_35 = arith.constant 1 : index
    %c0_36 = arith.constant 0 : index
    %71 = memref.load %arg4[%c1_35, %c0_36] : memref<4x4xf32, #tpu.memory_space<smem>>
    %72 = vector.broadcast %71 : f32 to vector<1x128xf32>
    %73 = arith.mulf %35, %72 : vector<1x128xf32>
    %74 = arith.addf %70, %73 : vector<1x128xf32>
    %c2_37 = arith.constant 2 : index
    %c0_38 = arith.constant 0 : index
    %75 = memref.load %arg4[%c2_37, %c0_38] : memref<4x4xf32, #tpu.memory_space<smem>>
    %76 = vector.broadcast %75 : f32 to vector<1x128xf32>
    %77 = arith.mulf %51, %76 : vector<1x128xf32>
    %78 = arith.addf %74, %77 : vector<1x128xf32>
    %c3_39 = arith.constant 3 : index
    %c0_40 = arith.constant 0 : index
    %79 = memref.load %arg4[%c3_39, %c0_40] : memref<4x4xf32, #tpu.memory_space<smem>>
    %80 = vector.broadcast %79 : f32 to vector<1x128xf32>
    %81 = arith.mulf %67, %80 : vector<1x128xf32>
    %82 = arith.addf %78, %81 : vector<1x128xf32>
    %c0_41 = arith.constant 0 : index
    %c0_42 = arith.constant 0 : index
    %83 = memref.load %arg5[%c0_41, %c0_42] : memref<1x4xf32, #tpu.memory_space<smem>>
    %84 = vector.broadcast %83 : f32 to vector<1x128xf32>
    %85 = arith.addf %82, %84 : vector<1x128xf32>
    %cst_43 = arith.constant 0.000000e+00 : f32
    %86 = vector.broadcast %cst_43 : f32 to vector<1x128xf32>
    %87 = arith.subf %86, %85 : vector<1x128xf32>
    %88 = math.exp %87 : vector<1x128xf32>
    %cst_44 = arith.constant 1.000000e+00 : f32
    %89 = vector.broadcast %cst_44 : f32 to vector<1x128xf32>
    %90 = arith.addf %89, %88 : vector<1x128xf32>
    %91 = tpu.reciprocal %90 {approx = true} : vector<1x128xf32> -> vector<1x128xf32>
    %c0_45 = arith.constant 0 : index
    %c1_46 = arith.constant 1 : index
    %92 = memref.load %arg4[%c0_45, %c1_46] : memref<4x4xf32, #tpu.memory_space<smem>>
    %93 = vector.broadcast %92 : f32 to vector<1x128xf32>
    %94 = arith.mulf %19, %93 : vector<1x128xf32>
    %c1_47 = arith.constant 1 : index
    %c1_48 = arith.constant 1 : index
    %95 = memref.load %arg4[%c1_47, %c1_48] : memref<4x4xf32, #tpu.memory_space<smem>>
    %96 = vector.broadcast %95 : f32 to vector<1x128xf32>
    %97 = arith.mulf %35, %96 : vector<1x128xf32>
    %98 = arith.addf %94, %97 : vector<1x128xf32>
    %c2_49 = arith.constant 2 : index
    %c1_50 = arith.constant 1 : index
    %99 = memref.load %arg4[%c2_49, %c1_50] : memref<4x4xf32, #tpu.memory_space<smem>>
    %100 = vector.broadcast %99 : f32 to vector<1x128xf32>
    %101 = arith.mulf %51, %100 : vector<1x128xf32>
    %102 = arith.addf %98, %101 : vector<1x128xf32>
    %c3_51 = arith.constant 3 : index
    %c1_52 = arith.constant 1 : index
    %103 = memref.load %arg4[%c3_51, %c1_52] : memref<4x4xf32, #tpu.memory_space<smem>>
    %104 = vector.broadcast %103 : f32 to vector<1x128xf32>
    %105 = arith.mulf %67, %104 : vector<1x128xf32>
    %106 = arith.addf %102, %105 : vector<1x128xf32>
    %c0_53 = arith.constant 0 : index
    %c1_54 = arith.constant 1 : index
    %107 = memref.load %arg5[%c0_53, %c1_54] : memref<1x4xf32, #tpu.memory_space<smem>>
    %108 = vector.broadcast %107 : f32 to vector<1x128xf32>
    %109 = arith.addf %106, %108 : vector<1x128xf32>
    %cst_55 = arith.constant 0.000000e+00 : f32
    %110 = vector.broadcast %cst_55 : f32 to vector<1x128xf32>
    %111 = arith.subf %110, %109 : vector<1x128xf32>
    %112 = math.exp %111 : vector<1x128xf32>
    %cst_56 = arith.constant 1.000000e+00 : f32
    %113 = vector.broadcast %cst_56 : f32 to vector<1x128xf32>
    %114 = arith.addf %113, %112 : vector<1x128xf32>
    %115 = tpu.reciprocal %114 {approx = true} : vector<1x128xf32> -> vector<1x128xf32>
    %c0_57 = arith.constant 0 : index
    %c2_58 = arith.constant 2 : index
    %116 = memref.load %arg4[%c0_57, %c2_58] : memref<4x4xf32, #tpu.memory_space<smem>>
    %117 = vector.broadcast %116 : f32 to vector<1x128xf32>
    %118 = arith.mulf %19, %117 : vector<1x128xf32>
    %c1_59 = arith.constant 1 : index
    %c2_60 = arith.constant 2 : index
    %119 = memref.load %arg4[%c1_59, %c2_60] : memref<4x4xf32, #tpu.memory_space<smem>>
    %120 = vector.broadcast %119 : f32 to vector<1x128xf32>
    %121 = arith.mulf %35, %120 : vector<1x128xf32>
    %122 = arith.addf %118, %121 : vector<1x128xf32>
    %c2_61 = arith.constant 2 : index
    %c2_62 = arith.constant 2 : index
    %123 = memref.load %arg4[%c2_61, %c2_62] : memref<4x4xf32, #tpu.memory_space<smem>>
    %124 = vector.broadcast %123 : f32 to vector<1x128xf32>
    %125 = arith.mulf %51, %124 : vector<1x128xf32>
    %126 = arith.addf %122, %125 : vector<1x128xf32>
    %c3_63 = arith.constant 3 : index
    %c2_64 = arith.constant 2 : index
    %127 = memref.load %arg4[%c3_63, %c2_64] : memref<4x4xf32, #tpu.memory_space<smem>>
    %128 = vector.broadcast %127 : f32 to vector<1x128xf32>
    %129 = arith.mulf %67, %128 : vector<1x128xf32>
    %130 = arith.addf %126, %129 : vector<1x128xf32>
    %c0_65 = arith.constant 0 : index
    %c2_66 = arith.constant 2 : index
    %131 = memref.load %arg5[%c0_65, %c2_66] : memref<1x4xf32, #tpu.memory_space<smem>>
    %132 = vector.broadcast %131 : f32 to vector<1x128xf32>
    %133 = arith.addf %130, %132 : vector<1x128xf32>
    %cst_67 = arith.constant 0.000000e+00 : f32
    %134 = vector.broadcast %cst_67 : f32 to vector<1x128xf32>
    %135 = arith.subf %134, %133 : vector<1x128xf32>
    %136 = math.exp %135 : vector<1x128xf32>
    %cst_68 = arith.constant 1.000000e+00 : f32
    %137 = vector.broadcast %cst_68 : f32 to vector<1x128xf32>
    %138 = arith.addf %137, %136 : vector<1x128xf32>
    %139 = tpu.reciprocal %138 {approx = true} : vector<1x128xf32> -> vector<1x128xf32>
    %c0_69 = arith.constant 0 : index
    %c3_70 = arith.constant 3 : index
    %140 = memref.load %arg4[%c0_69, %c3_70] : memref<4x4xf32, #tpu.memory_space<smem>>
    %141 = vector.broadcast %140 : f32 to vector<1x128xf32>
    %142 = arith.mulf %19, %141 : vector<1x128xf32>
    %c1_71 = arith.constant 1 : index
    %c3_72 = arith.constant 3 : index
    %143 = memref.load %arg4[%c1_71, %c3_72] : memref<4x4xf32, #tpu.memory_space<smem>>
    %144 = vector.broadcast %143 : f32 to vector<1x128xf32>
    %145 = arith.mulf %35, %144 : vector<1x128xf32>
    %146 = arith.addf %142, %145 : vector<1x128xf32>
    %c2_73 = arith.constant 2 : index
    %c3_74 = arith.constant 3 : index
    %147 = memref.load %arg4[%c2_73, %c3_74] : memref<4x4xf32, #tpu.memory_space<smem>>
    %148 = vector.broadcast %147 : f32 to vector<1x128xf32>
    %149 = arith.mulf %51, %148 : vector<1x128xf32>
    %150 = arith.addf %146, %149 : vector<1x128xf32>
    %c3_75 = arith.constant 3 : index
    %c3_76 = arith.constant 3 : index
    %151 = memref.load %arg4[%c3_75, %c3_76] : memref<4x4xf32, #tpu.memory_space<smem>>
    %152 = vector.broadcast %151 : f32 to vector<1x128xf32>
    %153 = arith.mulf %67, %152 : vector<1x128xf32>
    %154 = arith.addf %150, %153 : vector<1x128xf32>
    %c0_77 = arith.constant 0 : index
    %c3_78 = arith.constant 3 : index
    %155 = memref.load %arg5[%c0_77, %c3_78] : memref<1x4xf32, #tpu.memory_space<smem>>
    %156 = vector.broadcast %155 : f32 to vector<1x128xf32>
    %157 = arith.addf %154, %156 : vector<1x128xf32>
    %cst_79 = arith.constant 0.000000e+00 : f32
    %158 = vector.broadcast %cst_79 : f32 to vector<1x128xf32>
    %159 = arith.subf %158, %157 : vector<1x128xf32>
    %160 = math.exp %159 : vector<1x128xf32>
    %cst_80 = arith.constant 1.000000e+00 : f32
    %161 = vector.broadcast %cst_80 : f32 to vector<1x128xf32>
    %162 = arith.addf %161, %160 : vector<1x128xf32>
    %163 = tpu.reciprocal %162 {approx = true} : vector<1x128xf32> -> vector<1x128xf32>
    %c0_81 = arith.constant 0 : index
    %c0_82 = arith.constant 0 : index
    %164 = memref.load %arg6[%c0_81, %c0_82] : memref<4x1xf32, #tpu.memory_space<smem>>
    %165 = vector.broadcast %164 : f32 to vector<1x128xf32>
    %166 = arith.mulf %91, %165 : vector<1x128xf32>
    %c1_83 = arith.constant 1 : index
    %c0_84 = arith.constant 0 : index
    %167 = memref.load %arg6[%c1_83, %c0_84] : memref<4x1xf32, #tpu.memory_space<smem>>
    %168 = vector.broadcast %167 : f32 to vector<1x128xf32>
    %169 = arith.mulf %115, %168 : vector<1x128xf32>
    %170 = arith.addf %166, %169 : vector<1x128xf32>
    %c2_85 = arith.constant 2 : index
    %c0_86 = arith.constant 0 : index
    %171 = memref.load %arg6[%c2_85, %c0_86] : memref<4x1xf32, #tpu.memory_space<smem>>
    %172 = vector.broadcast %171 : f32 to vector<1x128xf32>
    %173 = arith.mulf %139, %172 : vector<1x128xf32>
    %174 = arith.addf %170, %173 : vector<1x128xf32>
    %c3_87 = arith.constant 3 : index
    %c0_88 = arith.constant 0 : index
    %175 = memref.load %arg6[%c3_87, %c0_88] : memref<4x1xf32, #tpu.memory_space<smem>>
    %176 = vector.broadcast %175 : f32 to vector<1x128xf32>
    %177 = arith.mulf %163, %176 : vector<1x128xf32>
    %178 = arith.addf %174, %177 : vector<1x128xf32>
    %c0_89 = arith.constant 0 : index
    %c0_90 = arith.constant 0 : index
    %179 = memref.load %arg7[%c0_89, %c0_90] : memref<1x1xf32, #tpu.memory_space<smem>>
    %180 = vector.broadcast %179 : f32 to vector<1x128xf32>
    %181 = arith.addf %178, %180 : vector<1x128xf32>
    %cst_91 = arith.constant 0.000000e+00 : f32
    %182 = vector.broadcast %cst_91 : f32 to vector<1x128xf32>
    %183 = arith.subf %182, %181 : vector<1x128xf32>
    %184 = math.exp %183 : vector<1x128xf32>
    %cst_92 = arith.constant 1.000000e+00 : f32
    %185 = vector.broadcast %cst_92 : f32 to vector<1x128xf32>
    %186 = arith.addf %185, %184 : vector<1x128xf32>
    %187 = tpu.reciprocal %186 {approx = true} : vector<1x128xf32> -> vector<1x128xf32>
    %c0_93 = arith.constant 0 : index
    %c0_94 = arith.constant 0 : index
    %188 = vector.load %arg8[%c0_93, %c0_94] : memref<1x128xf32, #tpu.memory_space<vmem>>, vector<1x128xf32>
    tpu.vector_store %arg8[%c0_93, %c0_94], %187 {strides = array<i32>} : memref<1x128xf32, #tpu.memory_space<vmem>>, vector<1x128xf32>,
    return
  }
  func.func @transform_0(%arg0: i32) -> (i32, i32, i32) {
    %c0_i32 = arith.constant 0 : i32
    %c0_i32_0 = arith.constant 0 : i32
    %c0_i32_1 = arith.constant 0 : i32
    return %c0_i32, %arg0, %c0_i32_0 : i32, i32, i32
  }
  func.func @transform_1(%arg0: i32) -> (i32, i32) {
    %c0_i32 = arith.constant 0 : i32
    %c0_i32_0 = arith.constant 0 : i32
    %c0_i32_1 = arith.constant 0 : i32
    return %c0_i32, %c0_i32_0 : i32, i32
  }
  func.func @transform_2(%arg0: i32) -> (i32, i32) {
    %c0_i32 = arith.constant 0 : i32
    %c0_i32_0 = arith.constant 0 : i32
    %c0_i32_1 = arith.constant 0 : i32
    return %c0_i32, %c0_i32_0 : i32, i32
  }
  func.func @transform_3(%arg0: i32) -> (i32, i32) {
    %c0_i32 = arith.constant 0 : i32
    %c0_i32_0 = arith.constant 0 : i32
    %c0_i32_1 = arith.constant 0 : i32
    return %c0_i32, %c0_i32_0 : i32, i32
  }
  func.func @transform_4(%arg0: i32) -> (i32, i32) {
    %c0_i32 = arith.constant 0 : i32
    %c0_i32_0 = arith.constant 0 : i32
    %c0_i32_1 = arith.constant 0 : i32
    return %c0_i32, %c0_i32_0 : i32, i32
  }
  func.func @transform_5(%arg0: i32) -> (i32, i32) {
    %c0_i32 = arith.constant 0 : i32
    %c0_i32_0 = arith.constant 0 : i32
    %c0_i32_1 = arith.constant 0 : i32
    return %c0_i32, %c0_i32_0 : i32, i32
  }
  func.func @transform_6(%arg0: i32) -> (i32, i32) {
    %c0_i32 = arith.constant 0 : i32
    %c0_i32_0 = arith.constant 0 : i32
    %c0_i32_1 = arith.constant 0 : i32
    return %c0_i32, %c0_i32_0 : i32, i32
  }
  func.func @transform_7(%arg0: i32) -> (i32, i32) {
    %c0_i32 = arith.constant 0 : i32
    %c0_i32_0 = arith.constant 0 : i32
    return %arg0, %c0_i32 : i32, i32
  }
}

</mosaic_0001>

<llo_original>
// kernel: tpu_custom_call.1
$region0: #{tpu_custom_call.1}
  #allocation0 [shape = 'u32[]', space=smem, size = 0x4, offset = 0x4, fixed_abs, tag = 'smem constant byte address 0x4 - core index']
  #allocation1 [shape = 'u32[144,128]{1,0:T(1,128)}', space=vmem, size = 0x12000, scoped, tag = 'internal scratch']
  #allocation2 [shape = 'f32[1,1]{1,0:T(1,128)S(6)}', space=smem, size = 0x200, scoped, tag = 'scoped memory for tpu_custom_call.1']
  %s0 = inlined_call_operand.vmem [shape: f32[2,1,128], index: 0, kind: input, shape index: {}]
  %s1 = inlined_call_operand.vmem [shape: f32[2,4], index: 1, kind: input, shape index: {}]
  %s2 = inlined_call_operand.vmem [shape: f32[1,4], index: 2, kind: input, shape index: {}]
  %s3 = inlined_call_operand.vmem [shape: f32[4,4], index: 3, kind: input, shape index: {}]
  %s4 = inlined_call_operand.vmem [shape: f32[1,4], index: 4, kind: input, shape index: {}]
  %s5 = inlined_call_operand.vmem [shape: f32[4,1], index: 5, kind: input, shape index: {}]
  %s6 = inlined_call_operand.<no memory space> [shape: f32[1,1], index: 6, kind: input, shape index: {}]
  %s7 = inlined_call_operand.hbm [shape: f32[1,128], index: 7, kind: output, shape index: {}]
  %s8 = sld [smem:[#allocation0]]
  $region58: #{tpu_custom_call.1} parent=0
    _
  %s10 = ssub.s32 1, %s8
  %s11 = scalar_select 0, %s10, %s8
  %12 = sst [smem:[#allocation2]] %s6
  $region1: #{tpu_custom_call.1} parent=0
    #allocation3 [shape = 'u8[1024]{0}', space=smem, size = 0x400, scoped, tag = 'input window, operand 1, single buffered']
    #allocation4 [shape = 's32[1]{0}', space=sflag, size = 0x4, scoped, tag = 'scoped memory for tpu_custom_call.1']
    #allocation5 [shape = 's32[1]{0}', space=sflag, size = 0x4, scoped, tag = 'scoped memory for tpu_custom_call.1']
    #allocation6 [shape = 'u8[512]{0}', space=smem, size = 0x200, scoped, tag = 'input window, operand 2, single buffered']
    #allocation7 [shape = 's32[1]{0}', space=sflag, size = 0x4, scoped, tag = 'scoped memory for tpu_custom_call.1']
    #allocation8 [shape = 'u8[2048]{0}', space=smem, size = 0x800, scoped, tag = 'input window, operand 3, single buffered']
    #allocation9 [shape = 'u8[512]{0}', space=smem, size = 0x200, scoped, tag = 'input window, operand 4, single buffered']
    #allocation10 [shape = 's32[1]{0}', space=sflag, size = 0x4, scoped, tag = 'scoped memory for tpu_custom_call.1']
    #allocation11 [shape = 'u8[2048]{0}', space=smem, size = 0x800, scoped, tag = 'input window, operand 5, single buffered']
    #allocation12 [shape = 'u8[512]{0}', space=vmem, size = 0x400, scoped, tag = 'output window, operand 0, single buffered']
    %13 = vsyncpa [#allocation5], 0
    %14 = vsyncpa [#allocation7], 0
    %15 = vsyncpa [#allocation10], 0
    %16 = vsyncpa [#allocation4], 0
    // Predicated region
    $region2: #{tpu_custom_call.1} parent=1 // pred_check
      _
    $region3: #{tpu_custom_call.1} parent=1 // pred_check_branch
      %18 = sbr.rel (0) target = $region5
    $region4: #{tpu_custom_call.1} parent=1 // pred_region
      _
    $region5: #{tpu_custom_call.1} parent=1 // pred_fallthru
      _
    // Predicated region
    $region6: #{tpu_custom_call.1} parent=1 // pred_check
      _
    $region7: #{tpu_custom_call.1} parent=1 // pred_check_branch
      %20 = sbr.rel (0) target = $region9
    $region8: #{tpu_custom_call.1} parent=1 // pred_region
      %s22 = ssub.s32 32, 32
      %23 = vsyncadd [#allocation5], %s22
      %s25 = sshll.u32 %s1, 4
      %s26 = int_to_ptr.vmem [resolvable:$true] %s25
      %28 = dma.vmem_to_smem %s26, 32, [#allocation3], [#allocation5]
    $region9: #{tpu_custom_call.1} parent=1 // pred_fallthru
      _
    // Predicated region
    $region10: #{tpu_custom_call.1} parent=1 // pred_check
      _
    $region11: #{tpu_custom_call.1} parent=1 // pred_check_branch
      %30 = sbr.rel (0) target = $region13
    $region12: #{tpu_custom_call.1} parent=1 // pred_region
      %s32 = ssub.s32 16, 16
      %33 = vsyncadd [#allocation7], %s32
      %s35 = sshll.u32 %s2, 4
      %s36 = int_to_ptr.vmem [resolvable:$true] %s35
      %38 = dma.vmem_to_smem %s36, 16, [#allocation6], [#allocation7]
    $region13: #{tpu_custom_call.1} parent=1 // pred_fallthru
      _
    // Predicated region
    $region14: #{tpu_custom_call.1} parent=1 // pred_check
      _
    $region15: #{tpu_custom_call.1} parent=1 // pred_check_branch
      %40 = sbr.rel (0) target = $region17
    $region16: #{tpu_custom_call.1} parent=1 // pred_region
      %s42 = ssub.s32 64, 64
      %43 = vsyncadd [#allocation7], %s42
      %s45 = sshll.u32 %s3, 4
      %s46 = int_to_ptr.vmem [resolvable:$true] %s45
      %48 = dma.vmem_to_smem %s46, 64, [#allocation8], [#allocation7]
    $region17: #{tpu_custom_call.1} parent=1 // pred_fallthru
      _
    // Predicated region
    $region18: #{tpu_custom_call.1} parent=1 // pred_check
      _
    $region19: #{tpu_custom_call.1} parent=1 // pred_check_branch
      %50 = sbr.rel (0) target = $region21
    $region20: #{tpu_custom_call.1} parent=1 // pred_region
      %s52 = ssub.s32 16, 16
      %53 = vsyncadd [#allocation10], %s52
      %s55 = sshll.u32 %s4, 4
      %s56 = int_to_ptr.vmem [resolvable:$true] %s55
      %58 = dma.vmem_to_smem %s56, 16, [#allocation9], [#allocation10]
    $region21: #{tpu_custom_call.1} parent=1 // pred_fallthru
      _
    // Predicated region
    $region22: #{tpu_custom_call.1} parent=1 // pred_check
      _
    $region23: #{tpu_custom_call.1} parent=1 // pred_check_branch
      %60 = sbr.rel (0) target = $region25
    $region24: #{tpu_custom_call.1} parent=1 // pred_region
      %s62 = ssub.s32 64, 64
      %63 = vsyncadd [#allocation10], %s62
      %s65 = sshll.u32 %s5, 4
      %s66 = int_to_ptr.vmem [resolvable:$true] %s65
      %68 = dma.vmem_to_smem %s66, 64, [#allocation11], [#allocation10]
    $region25: #{tpu_custom_call.1} parent=1 // pred_fallthru
      _
    // Predicated region
    $region26: #{tpu_custom_call.1} parent=1 // pred_check
      _
    $region27: #{tpu_custom_call.1} parent=1 // pred_check_branch
      %70 = sbr.rel (0) target = $region29
    $region28: #{tpu_custom_call.1} parent=1 // pred_region
      _
    $region29: #{tpu_custom_call.1} parent=1 // pred_fallthru
      _
    // Predicated region
    $region30: #{tpu_custom_call.1} parent=1 // pred_check
      _
    $region31: #{tpu_custom_call.1} parent=1 // pred_check_branch
      %72 = sbr.rel (0) target = $region33
    $region32: #{tpu_custom_call.1} parent=1 // pred_region
      %73 = dma.done [#allocation5], 32
    $region33: #{tpu_custom_call.1} parent=1 // pred_fallthru
      _
    // Predicated region
    $region34: #{tpu_custom_call.1} parent=1 // pred_check
      _
    $region35: #{tpu_custom_call.1} parent=1 // pred_check_branch
      %75 = sbr.rel (0) target = $region37
    $region36: #{tpu_custom_call.1} parent=1 // pred_region
      %76 = dma.done [#allocation7], 16
    $region37: #{tpu_custom_call.1} parent=1 // pred_fallthru
      _
    // Predicated region
    $region38: #{tpu_custom_call.1} parent=1 // pred_check
      _
    $region39: #{tpu_custom_call.1} parent=1 // pred_check_branch
      %78 = sbr.rel (0) target = $region41
    $region40: #{tpu_custom_call.1} parent=1 // pred_region
      %79 = dma.done [#allocation7], 64
    $region41: #{tpu_custom_call.1} parent=1 // pred_fallthru
      _
    // Predicated region
    $region42: #{tpu_custom_call.1} parent=1 // pred_check
      _
    $region43: #{tpu_custom_call.1} parent=1 // pred_check_branch
      %81 = sbr.rel (0) target = $region45
    $region44: #{tpu_custom_call.1} parent=1 // pred_region
      %82 = dma.done [#allocation10], 16
    $region45: #{tpu_custom_call.1} parent=1 // pred_fallthru
      _
    // Predicated region
    $region46: #{tpu_custom_call.1} parent=1 // pred_check
      _
    $region47: #{tpu_custom_call.1} parent=1 // pred_check_branch
      %84 = sbr.rel (0) target = $region49
    $region48: #{tpu_custom_call.1} parent=1 // pred_region
      %85 = dma.done [#allocation10], 64
    $region49: #{tpu_custom_call.1} parent=1 // pred_fallthru
      _
    %86 = sfence
    %v87 = vld [vmem:[%s0] sm:$0x1]
    %s88 = scalar_lea.vmem %s0, 1
    %v89 = vld [vmem:[%s88] sm:$0x1]
    %s90 = sld [smem:[#allocation3]]
    %v91 = vstv %s90
    %v92 = vmul.f32 %v91, %v87
    %s93 = sld [smem:[#allocation3 + $0x80]]
    %v94 = vstv %s93
    %v95 = vmul.f32 %v94, %v89
    %v96 = vadd.f32 %v92, %v95
    %s97 = sld [smem:[#allocation6]]
    %v98 = vstv %s97
    %v99 = vadd.f32 %v96, %v98
    %v100 = vsub.f32 0.0, %v99
    %v101 = vmul.f32 %v100, 1.442695
    %v102 = vpow.pop %v101
    %v103 = vadd.f32 %v102, 1.0
    %v104 = vrcp.pop %v103
    %s105 = sld [smem:[#allocation3 + $0x1]]
    %v106 = vstv %s105
    %v107 = vmul.f32 %v106, %v87
    %s108 = sld [smem:[#allocation3 + $0x81]]
    %v109 = vstv %s108
    %v110 = vmul.f32 %v109, %v89
    %v111 = vadd.f32 %v107, %v110
    %s112 = sld [smem:[#allocation6 + $0x1]]
    %v113 = vstv %s112
    %v114 = vadd.f32 %v111, %v113
    %v115 = vsub.f32 0.0, %v114
    %v116 = vmul.f32 %v115, 1.442695
    %v117 = vpow.pop %v116
    %v118 = vadd.f32 %v117, 1.0
    %v119 = vrcp.pop %v118
    %s120 = sld [smem:[#allocation3 + $0x2]]
    %v121 = vstv %s120
    %v122 = vmul.f32 %v121, %v87
    %s123 = sld [smem:[#allocation3 + $0x82]]
    %v124 = vstv %s123
    %v125 = vmul.f32 %v124, %v89
    %v126 = vadd.f32 %v122, %v125
    %s127 = sld [smem:[#allocation6 + $0x2]]
    %v128 = vstv %s127
    %v129 = vadd.f32 %v126, %v128
    %v130 = vsub.f32 0.0, %v129
    %v131 = vmul.f32 %v130, 1.442695
    %v132 = vpow.pop %v131
    %v133 = vadd.f32 %v132, 1.0
    %v134 = vrcp.pop %v133
    %s135 = sld [smem:[#allocation3 + $0x3]]
    %v136 = vstv %s135
    %v137 = vmul.f32 %v136, %v87
    %s138 = sld [smem:[#allocation3 + $0x83]]
    %v139 = vstv %s138
    %v140 = vmul.f32 %v139, %v89
    %v141 = vadd.f32 %v137, %v140
    %s142 = sld [smem:[#allocation6 + $0x3]]
    %v143 = vstv %s142
    %v144 = vadd.f32 %v141, %v143
    %v145 = vsub.f32 0.0, %v144
    %v146 = vmul.f32 %v145, 1.442695
    %v147 = vpow.pop %v146
    %v148 = vadd.f32 %v147, 1.0
    %v149 = vrcp.pop %v148
    %s150 = sld [smem:[#allocation8]]
    %v151 = vstv %s150
    %v152 = vmul.f32 %v104, %v151
    %s153 = sld [smem:[#allocation8 + $0x80]]
    %v154 = vstv %s153
    %v155 = vmul.f32 %v119, %v154
    %v156 = vadd.f32 %v152, %v155
    %s157 = sld [smem:[#allocation8 + $0x100]]
    %v158 = vstv %s157
    %v159 = vmul.f32 %v134, %v158
    %v160 = vadd.f32 %v156, %v159
    %s161 = sld [smem:[#allocation8 + $0x180]]
    %v162 = vstv %s161
    %v163 = vmul.f32 %v149, %v162
    %v164 = vadd.f32 %v160, %v163
    %s165 = sld [smem:[#allocation9]]
    %v166 = vstv %s165
    %v167 = vadd.f32 %v164, %v166
    %v168 = vsub.f32 0.0, %v167
    %v169 = vmul.f32 %v168, 1.442695
    %v170 = vpow.pop %v169
    %v171 = vadd.f32 %v170, 1.0
    %v172 = vrcp.pop %v171
    %s173 = sld [smem:[#allocation8 + $0x1]]
    %v174 = vstv %s173
    %v175 = vmul.f32 %v104, %v174
    %s176 = sld [smem:[#allocation8 + $0x81]]
    %v177 = vstv %s176
    %v178 = vmul.f32 %v119, %v177
    %v179 = vadd.f32 %v175, %v178
    %s180 = sld [smem:[#allocation8 + $0x101]]
    %v181 = vstv %s180
    %v182 = vmul.f32 %v134, %v181
    %v183 = vadd.f32 %v179, %v182
    %s184 = sld [smem:[#allocation8 + $0x181]]
    %v185 = vstv %s184
    %v186 = vmul.f32 %v149, %v185
    %v187 = vadd.f32 %v183, %v186
    %s188 = sld [smem:[#allocation9 + $0x1]]
    %v189 = vstv %s188
    %v190 = vadd.f32 %v187, %v189
    %v191 = vsub.f32 0.0, %v190
    %v192 = vmul.f32 %v191, 1.442695
    %v193 = vpow.pop %v192
    %v194 = vadd.f32 %v193, 1.0
    %v195 = vrcp.pop %v194
    %s196 = sld [smem:[#allocation8 + $0x2]]
    %v197 = vstv %s196
    %v198 = vmul.f32 %v104, %v197
    %s199 = sld [smem:[#allocation8 + $0x82]]
    %v200 = vstv %s199
    %v201 = vmul.f32 %v119, %v200
    %v202 = vadd.f32 %v198, %v201
    %s203 = sld [smem:[#allocation8 + $0x102]]
    %v204 = vstv %s203
    %v205 = vmul.f32 %v134, %v204
    %v206 = vadd.f32 %v202, %v205
    %s207 = sld [smem:[#allocation8 + $0x182]]
    %v208 = vstv %s207
    %v209 = vmul.f32 %v149, %v208
    %v210 = vadd.f32 %v206, %v209
    %s211 = sld [smem:[#allocation9 + $0x2]]
    %v212 = vstv %s211
    %v213 = vadd.f32 %v210, %v212
    %v214 = vsub.f32 0.0, %v213
    %v215 = vmul.f32 %v214, 1.442695
    %v216 = vpow.pop %v215
    %v217 = vadd.f32 %v216, 1.0
    %v218 = vrcp.pop %v217
    %s219 = sld [smem:[#allocation8 + $0x3]]
    %v220 = vstv %s219
    %v221 = vmul.f32 %v104, %v220
    %s222 = sld [smem:[#allocation8 + $0x83]]
    %v223 = vstv %s222
    %v224 = vmul.f32 %v119, %v223
    %v225 = vadd.f32 %v221, %v224
    %s226 = sld [smem:[#allocation8 + $0x103]]
    %v227 = vstv %s226
    %v228 = vmul.f32 %v134, %v227
    %v229 = vadd.f32 %v225, %v228
    %s230 = sld [smem:[#allocation8 + $0x183]]
    %v231 = vstv %s230
    %v232 = vmul.f32 %v149, %v231
    %v233 = vadd.f32 %v229, %v232
    %s234 = sld [smem:[#allocation9 + $0x3]]
    %v235 = vstv %s234
    %v236 = vadd.f32 %v233, %v235
    %v237 = vsub.f32 0.0, %v236
    %v238 = vmul.f32 %v237, 1.442695
    %v239 = vpow.pop %v238
    %v240 = vadd.f32 %v239, 1.0
    %v241 = vrcp.pop %v240
    %s242 = sld [smem:[#allocation11]]
    %v243 = vstv %s242
    %v244 = vmul.f32 %v172, %v243
    %s245 = sld [smem:[#allocation11 + $0x80]]
    %v246 = vstv %s245
    %v247 = vmul.f32 %v195, %v246
    %v248 = vadd.f32 %v244, %v247
    %s249 = sld [smem:[#allocation11 + $0x100]]
    %v250 = vstv %s249
    %v251 = vmul.f32 %v218, %v250
    %v252 = vadd.f32 %v248, %v251
    %s253 = sld [smem:[#allocation11 + $0x180]]
    %v254 = vstv %s253
    %v255 = vmul.f32 %v241, %v254
    %v256 = vadd.f32 %v252, %v255
    %s257 = sld [smem:[#allocation2]]
    %v258 = vstv %s257
    %v259 = vadd.f32 %v256, %v258
    %v260 = vsub.f32 0.0, %v259
    %v261 = vmul.f32 %v260, 1.442695
    %v262 = vpow.pop %v261
    %v263 = vadd.f32 %v262, 1.0
    %v264 = vrcp.pop %v263
    %265 = vst [vmem:[#allocation12] sm:$0x1] %v264
    // Predicated region
    $region50: #{tpu_custom_call.1} parent=1 // pred_check
      _
    $region51: #{tpu_custom_call.1} parent=1 // pred_check_branch
      %267 = sbr.rel (0) target = $region53
    $region52: #{tpu_custom_call.1} parent=1 // pred_region
      %s269 = ssub.s32 16, 16
      %270 = vsyncadd [#allocation4], %s269
      %s272 = sshll.u32 [#allocation12], 4
      %s273 = int_to_ptr.vmem [resolvable:$true] %s272
      %275 = dma.vmem_to_hbm [thread:$0]  %s273, 16, %s7, [#allocation4]
    $region53: #{tpu_custom_call.1} parent=1 // pred_fallthru
      _
    // Predicated region
    $region54: #{tpu_custom_call.1} parent=1 // pred_check
      _
    $region55: #{tpu_custom_call.1} parent=1 // pred_check_branch
      %277 = sbr.rel (0) target = $region57
    $region56: #{tpu_custom_call.1} parent=1 // pred_region
      %278 = dma.done [#allocation4], 16
    $region57: #{tpu_custom_call.1} parent=1 // pred_fallthru
      _
    %279 = vsyncpa [#allocation4], 1
    %280 = vsyncpa [#allocation5], 1
    %281 = vsyncpa [#allocation7], 1
    %282 = vsyncpa [#allocation10], 1

</llo_original>
